<compile_context>
chip_gen: v6e
topology: v6e:2x2x1
jax: 0.10.0
libtpu: 0.0.40
codegen_flags: <defaults>
</compile_context>

<pallas_src>
import functools

import jax
import jax.numpy as jnp
from jax.experimental import pallas as pl
from jax.experimental.pallas import tpu as pltpu


def _rmsnorm_kernel(x_ref, w_ref, o_ref, *, eps, inv_h):
    # x_ref: (row_tile, H) input tile (storage dtype)
    # w_ref: (1, H) weight in its native dtype (constant index_map -> resident)
    x = x_ref[...].astype(jnp.float32)
    # mean(x^2) over hidden dim as sum * (1/H): no runtime divide.
    ms = jnp.sum(x * x, axis=-1, keepdims=True) * inv_h
    inv = jax.lax.rsqrt(ms + eps)                 # EUP rsqrt
    normed = (x * inv).astype(x_ref.dtype)        # cast back to input dtype (HF)
    o_ref[...] = (w_ref[...] * normed).astype(o_ref.dtype)


def llama_rms_norm(hidden_states: jax.Array, weight: jax.Array,
                   eps: float = 1e-6, row_tile: int | None = None) -> jax.Array:
    """RMSNorm over the last dim. hidden_states: (..., H), weight: (H,)."""
    orig_shape = hidden_states.shape
    H = orig_shape[-1]
    x2d = hidden_states.reshape(-1, H)
    R = x2d.shape[0]

    in_dtype = hidden_states.dtype
    out_dtype = jnp.result_type(in_dtype, weight.dtype)   # HF promotion rule
    in_bytes = jnp.dtype(in_dtype).itemsize
    out_bytes = jnp.dtype(out_dtype).itemsize
    w_bytes = jnp.dtype(weight.dtype).itemsize

    # Sublane packing of the row dim: 8 f32 / 16 bf16 / 32 int8.  Align to the
    # finest pack among input and output dtypes.
    pack = max(8, 32 // min(in_bytes, out_bytes))

    # Physical VMEM of the actual part (v5e/v6e: 128 MiB, v7x: 64 MiB).
    try:
        vmem_cap = int(pltpu.get_tpu_info().vmem_capacity_bytes)
    except Exception:  # off-device tracing etc. -> conservative (fits v7x)
        vmem_cap = 64 << 20

    # Per-row working set: double-buffered input + double-buffered output
    # (storage dtypes) + ~2 f32 copies of the tile from the in-kernel upcast
    # (x.astype(f32) and x*x).
    per_row_bytes = 2 * H * in_bytes + 2 * H * out_bytes + 2 * H * 4

    if row_tile is None:
        budget_bytes = min(vmem_cap // 2, 48 << 20)
        row_tile = budget_bytes // max(per_row_bytes, 1)
        row_tile = max(pack, min(row_tile, 4096))
    # Align to the sublane pack and don't exceed the (rounded-up) row count.
    row_tile = max(pack, (row_tile // pack) * pack)
    rows_padded = ((R + pack - 1) // pack) * pack
    row_tile = min(row_tile, rows_padded)

    grid = pl.cdiv(R, row_tile)   # ragged last block handled by Pallas masking

    w2d = weight.reshape(1, H)    # kept in its own dtype (HF-exact)

    # VMEM limit: double-buffered in/out tiles + f32 intermediates + weight
    # + headroom, never exceeding the part's physical VMEM minus margin.
    tile_in = row_tile * H * in_bytes
    tile_out = row_tile * H * out_bytes
    tile_f32 = row_tile * H * 4
    need = 2 * tile_in + 2 * tile_out + 2 * tile_f32 + H * w_bytes
    vmem_limit = int(min(need + (4 << 20), vmem_cap - (8 << 20)))
    vmem_limit = max(vmem_limit, 16 << 20)

    # Advisory cost hint for XLA's scheduler around the custom call.
    cost = pl.CostEstimate(
        flops=8 * R * H,
        transcendentals=R,
        bytes_accessed=R * H * (in_bytes + out_bytes) + H * w_bytes,
    )

    kernel = functools.partial(_rmsnorm_kernel, eps=eps, inv_h=1.0 / H)

    out = pl.pallas_call(
        kernel,
        out_shape=jax.ShapeDtypeStruct((R, H), out_dtype),
        grid_spec=pltpu.PrefetchScalarGridSpec(
            num_scalar_prefetch=0,
            grid=(grid,),
            in_specs=[
                pl.BlockSpec((row_tile, H), lambda i: (i, 0)),
                pl.BlockSpec((1, H), lambda i: (0, 0)),
            ],
            out_specs=pl.BlockSpec((row_tile, H), lambda i: (i, 0)),
        ),
        compiler_params=pltpu.CompilerParams(
            dimension_semantics=("parallel",),   # rows independent (2-TC on v7x)
            vmem_limit_bytes=vmem_limit,
        ),
        cost_estimate=cost,
    )(x2d, w2d)

    return out.reshape(orig_shape)


def _reference_rms_norm(x, w, eps=1e-6):
    # Exact HF LlamaRMSNorm reference (as quoted in the IPEX module docstring).
    x32 = x.astype(jnp.float32)
    var = jnp.mean(x32 * x32, axis=-1, keepdims=True)
    y = (x32 * jax.lax.rsqrt(var + eps)).astype(x.dtype)
    return w * y


if __name__ == "__main__":
    eps = 1e-6
    key = jax.random.PRNGKey(0)

    # Primary test: shapes implied by the module (batch, seq, hidden).
    batch, seq, hidden = 2, 8, 32
    x = jax.random.normal(key, (batch, seq, hidden), dtype=jnp.float32)
    weight = jnp.ones((hidden,), dtype=jnp.float32)   # module inits weight to ones

    out = jax.block_until_ready(llama_rms_norm(x, weight, eps))
    ref = _reference_rms_norm(x, weight, eps)
    assert out.shape == x.shape and out.dtype == ref.dtype
    assert jnp.allclose(out, ref, atol=1e-5, rtol=1e-5)

    # Typical Llama case: bf16 activations + bf16 weight, lane-dense H=128,
    # ragged row count (not a multiple of the tile).
    k1, k2, k3 = jax.random.split(key, 3)
    x2 = jax.random.normal(k1, (3, 7, 128), dtype=jnp.bfloat16)
    w2 = (1.0 + 0.1 * jax.random.normal(k2, (128,), dtype=jnp.float32)).astype(jnp.bfloat16)
    out2 = jax.block_until_ready(llama_rms_norm(x2, w2, eps))
    ref2 = _reference_rms_norm(x2, w2, eps)
    assert out2.shape == x2.shape and out2.dtype == ref2.dtype == jnp.bfloat16
    assert jnp.allclose(out2.astype(jnp.float32), ref2.astype(jnp.float32),
                        atol=2e-2, rtol=2e-2)

    # Mixed precision (HF semantics): bf16 activations + f32 weight -> f32 out.
    x3 = jax.random.normal(k3, (4, 128), dtype=jnp.bfloat16)
    w3 = 1.0 + 0.1 * jax.random.normal(k2, (128,), dtype=jnp.float32)
    out3 = jax.block_until_ready(llama_rms_norm(x3, w3, eps))
    ref3 = _reference_rms_norm(x3, w3, eps)
    assert out3.dtype == ref3.dtype
    assert jnp.allclose(out3, ref3, atol=2e-2, rtol=2e-2)

    print("KERNEL_OK")
</pallas_src>

<mosaic_0001>
module attributes {stable_mosaic.version = 11 : i64} {
  func.func @_rmsnorm_kernel(%arg0: i32, %arg1: memref<16x32xf32, #tpu.memory_space<vmem>>, %arg2: memref<1x32xf32, #tpu.memory_space<vmem>>, %arg3: memref<16x32xf32, #tpu.memory_space<vmem>>) attributes {dimension_semantics = [#tpu.dimension_semantics<parallel>], iteration_bounds = array<i64: 1>, scalar_prefetch = 0 : i64, scratch_operands = 0 : i64, tpu.core_type = #tpu.core_type<tc>, window_params = [{transform_indices = @transform_0, window_bounds = array<i64: 16, 32>}, {pipeline_mode = #tpu.pipeline_mode<synchronous>, transform_indices = @transform_1, window_bounds = array<i64: 1, 32>}, {transform_indices = @transform_2, window_bounds = array<i64: 16, 32>}]} {
    %c0 = arith.constant 0 : index
    %c0_0 = arith.constant 0 : index
    %0 = vector.load %arg1[%c0, %c0_0] : memref<16x32xf32, #tpu.memory_space<vmem>>, vector<16x32xf32>
    %1 = arith.mulf %0, %0 : vector<16x32xf32>
    %cst = arith.constant dense<0.000000e+00> : vector<16xf32>
    %2 = vector.multi_reduction <add>, %1, %cst [1] : vector<16x32xf32> to vector<16xf32>
    %3 = vector.shape_cast %2 : vector<16xf32> to vector<16x1xf32>
    %cst_1 = arith.constant 3.125000e-02 : f32
    %4 = vector.broadcast %cst_1 : f32 to vector<16x1xf32>
    %5 = arith.mulf %3, %4 : vector<16x1xf32>
    %cst_2 = arith.constant 9.99999997E-7 : f32
    %6 = vector.broadcast %cst_2 : f32 to vector<16x1xf32>
    %7 = arith.addf %5, %6 : vector<16x1xf32>
    %8 = math.rsqrt %7 : vector<16x1xf32>
    %9 = vector.broadcast %8 : vector<16x1xf32> to vector<16x32xf32>
    %10 = arith.mulf %0, %9 : vector<16x32xf32>
    %c0_3 = arith.constant 0 : index
    %c0_4 = arith.constant 0 : index
    %11 = vector.load %arg2[%c0_3, %c0_4] : memref<1x32xf32, #tpu.memory_space<vmem>>, vector<1x32xf32>
    %12 = vector.broadcast %11 : vector<1x32xf32> to vector<16x32xf32>
    %13 = arith.mulf %12, %10 : vector<16x32xf32>
    %c0_5 = arith.constant 0 : index
    %c0_6 = arith.constant 0 : index
    %14 = vector.load %arg3[%c0_5, %c0_6] : memref<16x32xf32, #tpu.memory_space<vmem>>, vector<16x32xf32>
    tpu.vector_store %arg3[%c0_5, %c0_6], %13 {strides = array<i32>} : memref<16x32xf32, #tpu.memory_space<vmem>>, vector<16x32xf32>,
    return
  }
  func.func @transform_0(%arg0: i32) -> (i32, i32) {
    %c0_i32 = arith.constant 0 : i32
    %c0_i32_0 = arith.constant 0 : i32
    return %arg0, %c0_i32 : i32, i32
  }
  func.func @transform_1(%arg0: i32) -> (i32, i32) {
    %c0_i32 = arith.constant 0 : i32
    %c0_i32_0 = arith.constant 0 : i32
    %c0_i32_1 = arith.constant 0 : i32
    return %c0_i32, %c0_i32_0 : i32, i32
  }
  func.func @transform_2(%arg0: i32) -> (i32, i32) {
    %c0_i32 = arith.constant 0 : i32
    %c0_i32_0 = arith.constant 0 : i32
    return %arg0, %c0_i32 : i32, i32
  }
}

</mosaic_0001>

<llo_original>
// kernel: tpu_custom_call.1
$region0: #{tpu_custom_call.1}
  #allocation0 [shape = 'u32[]', space=smem, size = 0x4, offset = 0x4, fixed_abs, tag = 'smem constant byte address 0x4 - core index']
  #allocation1 [shape = 'u32[144,128]{1,0:T(1,128)}', space=vmem, size = 0x12000, scoped, tag = 'internal scratch']
  %s0 = inlined_call_operand.hbm [shape: f32[16,32], index: 0, kind: input, shape index: {}]
  %s1 = inlined_call_operand.vmem [shape: f32[1,32], index: 1, kind: input, shape index: {}]
  %s2 = inlined_call_operand.hbm [shape: f32[16,32], index: 2, kind: output, shape index: {}]
  %s3 = sld [smem:[#allocation0]]
  $region22: #{tpu_custom_call.1} parent=0
    _
  %s5 = ssub.s32 1, %s3
  %s6 = scalar_select 0, %s5, %s3
  $region1: #{tpu_custom_call.1} parent=0
    #allocation2 [shape = 'u8[8192]{0}', space=vmem, size = 0x2000, scoped, tag = 'input window, operand 0, single buffered']
    #allocation3 [shape = 's32[1]{0}', space=sflag, size = 0x4, scoped, tag = 'scoped memory for tpu_custom_call.1']
    #allocation4 [shape = 's32[1]{0}', space=sflag, size = 0x4, scoped, tag = 'scoped memory for tpu_custom_call.1']
    #allocation5 [shape = 'u8[8192]{0}', space=vmem, size = 0x2000, scoped, tag = 'output window, operand 0, single buffered']
    %7 = vsyncpa [#allocation3], 0
    %8 = vsyncpa [#allocation4], 0
    // Predicated region
    $region2: #{tpu_custom_call.1} parent=1 // pred_check
      _
    $region3: #{tpu_custom_call.1} parent=1 // pred_check_branch
      %10 = sbr.rel (0) target = $region5
    $region4: #{tpu_custom_call.1} parent=1 // pred_region
      %s12 = ssub.s32 256, 256
      %13 = vsyncadd [#allocation3], %s12
      %s14 = sshll.u32 [#allocation2], 4
      %s15 = int_to_ptr.vmem [resolvable:$true] %s14
      %20 = dma.hbm_to_vmem [thread:$0]  %s0, 256, %s15, [#allocation3], 128, 128, 8
    $region5: #{tpu_custom_call.1} parent=1 // pred_fallthru
      _
    // Predicated region
    $region6: #{tpu_custom_call.1} parent=1 // pred_check
      _
    $region7: #{tpu_custom_call.1} parent=1 // pred_check_branch
      %22 = sbr.rel (0) target = $region9
    $region8: #{tpu_custom_call.1} parent=1 // pred_region
      _
    $region9: #{tpu_custom_call.1} parent=1 // pred_fallthru
      _
    // Predicated region
    $region10: #{tpu_custom_call.1} parent=1 // pred_check
      _
    $region11: #{tpu_custom_call.1} parent=1 // pred_check_branch
      %24 = sbr.rel (0) target = $region13
    $region12: #{tpu_custom_call.1} parent=1 // pred_region
      %25 = dma.done [#allocation3], 256
    $region13: #{tpu_custom_call.1} parent=1 // pred_fallthru
      _
    %v26 = vld [vmem:[#allocation2] sm:$0xff]
    %v27 = vld [vmem:[#allocation2 + $0x8] sm:$0xff]
    %v28 = vmul.f32 %v26, %v26
    %v29 = vmul.f32 %v27, %v27
    %vm30 = vcmask 261120
    %v31 = vsel %vm30, %v28, 0.0
    %32 = vadd.xlane.f32.xlu0 %v31
    %v33 = vpop.xlane.xlu0 %32
    %v34 = vsel %vm30, %v29, 0.0
    %35 = vadd.xlane.f32.xlu0 %v34
    %v36 = vpop.xlane.xlu0 %35
    %v37 = vmul.f32 %v33, 0.03125
    %v38 = vmul.f32 %v36, 0.03125
    %v39 = vadd.f32 %v37, 1e-06
    %v40 = vadd.f32 %v38, 1e-06
    %v41 = vrsqrt.pop %v39
    %v42 = vrsqrt.pop %v40
    %v43 = vmul.f32 %v26, %v41
    %v44 = vmul.f32 %v27, %v42
    %v45 = vld [vmem:[%s1] sm:$0x1]
    %v47 = vlaneseq
    %v48 = vshrl.u32 %v47, 7
    %v49 = vsub.s32 0, %v48
    %v50 = vrot.slane %v45, %v49
    %v52 = vmul.f32 %v50, %v43
    %v53 = vmul.f32 %v50, %v44
    %54 = vst.msk [vmem:[#allocation5] sm:$0xff] %vm30, %v52
    %55 = vst.msk [vmem:[#allocation5 + $0x8] sm:$0xff] %vm30, %v53
    // Predicated region
    $region14: #{tpu_custom_call.1} parent=1 // pred_check
      _
    $region15: #{tpu_custom_call.1} parent=1 // pred_check_branch
      %57 = sbr.rel (0) target = $region17
    $region16: #{tpu_custom_call.1} parent=1 // pred_region
      %s59 = ssub.s32 256, 256
      %60 = vsyncadd [#allocation4], %s59
      %s61 = sshll.u32 [#allocation5], 4
      %s62 = int_to_ptr.vmem [resolvable:$true] %s61
      %67 = dma.vmem_to_hbm [thread:$0]  %s62, 256, %s2, [#allocation4], 128, 128, 8
    $region17: #{tpu_custom_call.1} parent=1 // pred_fallthru
      _
    // Predicated region
    $region18: #{tpu_custom_call.1} parent=1 // pred_check
      _
    $region19: #{tpu_custom_call.1} parent=1 // pred_check_branch
      %69 = sbr.rel (0) target = $region21
    $region20: #{tpu_custom_call.1} parent=1 // pred_region
      %70 = dma.done [#allocation4], 256
    $region21: #{tpu_custom_call.1} parent=1 // pred_fallthru
      _
    %71 = vsyncpa [#allocation3], 1
    %72 = vsyncpa [#allocation4], 1

</llo_original>
